<compile_context>
chip_gen: v7x
topology: tpu7x:2x2x1
jax: 0.10.0
libtpu: 0.0.40
codegen_flags: <defaults>
</compile_context>

<pallas_src>
import jax
import jax.numpy as jnp
from jax import lax
from jax.experimental import pallas as pl
from jax.experimental.pallas import tpu as pltpu

DIM = 128          # original module uses 500; kept small & 128-aligned for the demo
BATCH = 8
NUM_LAYERS = 8     # 5 pretrain linears + 3 fine-tuning linears
_B_TILE = 16       # bf16 LHS sublane tile


def _fine_tuning_kernel(x_ref, w_ref, b_ref, out_ref):
    """x_ref: (Bp, D) f32; w_ref: (L, D, D) bf16 in (in, out) layout;
    b_ref: (L, D) f32; out_ref: (Bp, D) f32."""
    x = x_ref[...]                                   # f32 activations
    b_all = b_ref[...]                               # (L, D) f32, one tile
    n_layers = w_ref.shape[0]
    for l in range(n_layers):                        # static unroll: 8 chained layers
        # Native single-pass bf16 x bf16 MXU matmul, f32 accumulation.
        y = jnp.dot(x.astype(jnp.bfloat16), w_ref[l],
                    preferred_element_type=jnp.float32)
        y = y + b_all[l][None, :]                    # (Bp, D) + (1, D), f32
        x = jnp.maximum(y, 0.0)                      # ReLU (VPU, f32)
    out_ref[...] = x.astype(out_ref.dtype)


def prepare_params(weights, biases):
    """One-time host-side parameter prep (NOT in the per-call jitted path):
    transpose PyTorch (out, in) -> (in, out), stack, cast weights to bf16.
    Biases stay f32 and are stacked as (L, D) (no size-1 sublane dim)."""
    w_stack = jnp.stack([jnp.transpose(w) for w in weights]).astype(jnp.bfloat16)
    b_stack = jnp.stack(biases).astype(jnp.float32)
    return w_stack, b_stack


@jax.jit
def fine_tuning_forward(x, w_stack, b_stack):
    """x: (B, D) f32; w_stack: (L, D, D) bf16 (in, out); b_stack: (L, D) f32."""
    b, d = x.shape
    n_layers = w_stack.shape[0]

    # Pad batch to a multiple of 16 so the bf16 LHS fills whole sublane tiles.
    bp = max(_B_TILE, ((b + _B_TILE - 1) // _B_TILE) * _B_TILE)
    if bp != b:
        x = jnp.pad(x, ((0, bp - b), (0, 0)))

    cost = pl.CostEstimate(
        flops=2 * n_layers * bp * d * d,
        transcendentals=0,
        bytes_accessed=(w_stack.size * w_stack.dtype.itemsize
                        + b_stack.size * b_stack.dtype.itemsize
                        + 2 * bp * d * x.dtype.itemsize),
    )

    out = pl.pallas_call(
        _fine_tuning_kernel,
        out_shape=jax.ShapeDtypeStruct((bp, d), x.dtype),
        # Gridless single-block call: whole arrays resident in VMEM.
        in_specs=[
            pl.BlockSpec(memory_space=pltpu.MemorySpace.VMEM),
            pl.BlockSpec(memory_space=pltpu.MemorySpace.VMEM),
            pl.BlockSpec(memory_space=pltpu.MemorySpace.VMEM),
        ],
        out_specs=pl.BlockSpec(memory_space=pltpu.MemorySpace.VMEM),
        cost_estimate=cost,
    )(x, w_stack, b_stack)

    return out[:b]


def _init_params(key, dim, num_layers):
    """Deterministic init mimicking nn.Linear default: U(-1/sqrt(in), 1/sqrt(in))."""
    bound = 1.0 / jnp.sqrt(jnp.float32(dim))
    weights, biases = [], []
    for _ in range(num_layers):
        kw, kb, key = jax.random.split(key, 3)
        weights.append(jax.random.uniform(kw, (dim, dim), jnp.float32, -bound, bound))
        biases.append(jax.random.uniform(kb, (dim,), jnp.float32, -bound, bound))
    return weights, biases


def _reference_forward(x, weights, biases):
    """Pure-JAX f32 reference of FineTuningModel.forward (PyTorch weight layout)."""
    out = x
    for w, bb in zip(weights, biases):
        out = jnp.maximum(
            jnp.dot(out, w.T, precision=lax.Precision.HIGHEST) + bb, 0.0
        )
    return out


if __name__ == "__main__":
    key = jax.random.PRNGKey(0)
    kx, kp = jax.random.split(key)
    x = jax.random.normal(kx, (BATCH, DIM), jnp.float32)
    weights, biases = _init_params(kp, DIM, NUM_LAYERS)

    # One-time prep outside the jitted per-call path.
    w_stack, b_stack = prepare_params(weights, biases)

    out = fine_tuning_forward(x, w_stack, b_stack)
    out = jax.block_until_ready(out)

    ref = _reference_forward(x, weights, biases)
    assert out.shape == (BATCH, DIM), out.shape
    # Tolerance accounts for bf16 weights + bf16 activations over the 8-layer chain.
    max_err = float(jnp.max(jnp.abs(out - ref)))
    assert jnp.allclose(out, ref, atol=5e-2, rtol=5e-2), max_err
    print("KERNEL_OK")
</pallas_src>

<mosaic_0001>
module attributes {stable_mosaic.version = 11 : i64} {
  func.func @_fine_tuning_kernel(%arg0: memref<16x128xf32, #tpu.memory_space<vmem>>, %arg1: memref<8x128x128xbf16, #tpu.memory_space<vmem>>, %arg2: memref<8x128xf32, #tpu.memory_space<vmem>>, %arg3: memref<16x128xf32, #tpu.memory_space<vmem>>) attributes {dimension_semantics = [], scalar_prefetch = 0 : i64, scratch_operands = 0 : i64, tpu.core_type = #tpu.core_type<tc>} {
    %c0 = arith.constant 0 : index
    %c0_0 = arith.constant 0 : index
    %0 = vector.load %arg0[%c0, %c0_0] : memref<16x128xf32, #tpu.memory_space<vmem>>, vector<16x128xf32>
    %c0_1 = arith.constant 0 : index
    %c0_2 = arith.constant 0 : index
    %1 = vector.load %arg2[%c0_1, %c0_2] : memref<8x128xf32, #tpu.memory_space<vmem>>, vector<8x128xf32>
    %2 = arith.truncf %0 : vector<16x128xf32> to vector<16x128xbf16>
    %c0_3 = arith.constant 0 : index
    %c0_4 = arith.constant 0 : index
    %c0_5 = arith.constant 0 : index
    %3 = vector.load %arg1[%c0_3, %c0_4, %c0_5] : memref<8x128x128xbf16, #tpu.memory_space<vmem>>, vector<1x128x128xbf16>
    %4 = vector.shape_cast %3 : vector<1x128x128xbf16> to vector<128x128xbf16>
    %cst = arith.constant dense<0.000000e+00> : vector<16x128xf32>
    %5 = tpu.matmul %2, %4, %cst {dimension_numbers = #tpu.dot_dimension_numbers<[1], [0], [0], [1], [0, 0, 1, 1], [], []>} : vector<16x128xbf16>, vector<128x128xbf16>, vector<16x128xf32> -> vector<16x128xf32>
    %6 = vector.extract_strided_slice %1 {offsets = [0, 0], sizes = [1, 128], strides = [1, 1]} : vector<8x128xf32> to vector<1x128xf32>
    %7 = vector.shape_cast %6 : vector<1x128xf32> to vector<128xf32>
    %8 = vector.shape_cast %7 : vector<128xf32> to vector<1x128xf32>
    %9 = vector.broadcast %8 : vector<1x128xf32> to vector<16x128xf32>
    %10 = arith.addf %5, %9 : vector<16x128xf32>
    %cst_6 = arith.constant 0.000000e+00 : f32
    %11 = vector.broadcast %cst_6 : f32 to vector<16x128xf32>
    %12 = arith.maximumf %10, %11 : vector<16x128xf32>
    %13 = arith.truncf %12 : vector<16x128xf32> to vector<16x128xbf16>
    %c1 = arith.constant 1 : index
    %c0_7 = arith.constant 0 : index
    %c0_8 = arith.constant 0 : index
    %14 = vector.load %arg1[%c1, %c0_7, %c0_8] : memref<8x128x128xbf16, #tpu.memory_space<vmem>>, vector<1x128x128xbf16>
    %15 = vector.shape_cast %14 : vector<1x128x128xbf16> to vector<128x128xbf16>
    %cst_9 = arith.constant dense<0.000000e+00> : vector<16x128xf32>
    %16 = tpu.matmul %13, %15, %cst_9 {dimension_numbers = #tpu.dot_dimension_numbers<[1], [0], [0], [1], [0, 0, 1, 1], [], []>} : vector<16x128xbf16>, vector<128x128xbf16>, vector<16x128xf32> -> vector<16x128xf32>
    %17 = vector.extract_strided_slice %1 {offsets = [1, 0], sizes = [1, 128], strides = [1, 1]} : vector<8x128xf32> to vector<1x128xf32>
    %18 = vector.shape_cast %17 : vector<1x128xf32> to vector<128xf32>
    %19 = vector.shape_cast %18 : vector<128xf32> to vector<1x128xf32>
    %20 = vector.broadcast %19 : vector<1x128xf32> to vector<16x128xf32>
    %21 = arith.addf %16, %20 : vector<16x128xf32>
    %cst_10 = arith.constant 0.000000e+00 : f32
    %22 = vector.broadcast %cst_10 : f32 to vector<16x128xf32>
    %23 = arith.maximumf %21, %22 : vector<16x128xf32>
    %24 = arith.truncf %23 : vector<16x128xf32> to vector<16x128xbf16>
    %c2 = arith.constant 2 : index
    %c0_11 = arith.constant 0 : index
    %c0_12 = arith.constant 0 : index
    %25 = vector.load %arg1[%c2, %c0_11, %c0_12] : memref<8x128x128xbf16, #tpu.memory_space<vmem>>, vector<1x128x128xbf16>
    %26 = vector.shape_cast %25 : vector<1x128x128xbf16> to vector<128x128xbf16>
    %cst_13 = arith.constant dense<0.000000e+00> : vector<16x128xf32>
    %27 = tpu.matmul %24, %26, %cst_13 {dimension_numbers = #tpu.dot_dimension_numbers<[1], [0], [0], [1], [0, 0, 1, 1], [], []>} : vector<16x128xbf16>, vector<128x128xbf16>, vector<16x128xf32> -> vector<16x128xf32>
    %28 = vector.extract_strided_slice %1 {offsets = [2, 0], sizes = [1, 128], strides = [1, 1]} : vector<8x128xf32> to vector<1x128xf32>
    %29 = vector.shape_cast %28 : vector<1x128xf32> to vector<128xf32>
    %30 = vector.shape_cast %29 : vector<128xf32> to vector<1x128xf32>
    %31 = vector.broadcast %30 : vector<1x128xf32> to vector<16x128xf32>
    %32 = arith.addf %27, %31 : vector<16x128xf32>
    %cst_14 = arith.constant 0.000000e+00 : f32
    %33 = vector.broadcast %cst_14 : f32 to vector<16x128xf32>
    %34 = arith.maximumf %32, %33 : vector<16x128xf32>
    %35 = arith.truncf %34 : vector<16x128xf32> to vector<16x128xbf16>
    %c3 = arith.constant 3 : index
    %c0_15 = arith.constant 0 : index
    %c0_16 = arith.constant 0 : index
    %36 = vector.load %arg1[%c3, %c0_15, %c0_16] : memref<8x128x128xbf16, #tpu.memory_space<vmem>>, vector<1x128x128xbf16>
    %37 = vector.shape_cast %36 : vector<1x128x128xbf16> to vector<128x128xbf16>
    %cst_17 = arith.constant dense<0.000000e+00> : vector<16x128xf32>
    %38 = tpu.matmul %35, %37, %cst_17 {dimension_numbers = #tpu.dot_dimension_numbers<[1], [0], [0], [1], [0, 0, 1, 1], [], []>} : vector<16x128xbf16>, vector<128x128xbf16>, vector<16x128xf32> -> vector<16x128xf32>
    %39 = vector.extract_strided_slice %1 {offsets = [3, 0], sizes = [1, 128], strides = [1, 1]} : vector<8x128xf32> to vector<1x128xf32>
    %40 = vector.shape_cast %39 : vector<1x128xf32> to vector<128xf32>
    %41 = vector.shape_cast %40 : vector<128xf32> to vector<1x128xf32>
    %42 = vector.broadcast %41 : vector<1x128xf32> to vector<16x128xf32>
    %43 = arith.addf %38, %42 : vector<16x128xf32>
    %cst_18 = arith.constant 0.000000e+00 : f32
    %44 = vector.broadcast %cst_18 : f32 to vector<16x128xf32>
    %45 = arith.maximumf %43, %44 : vector<16x128xf32>
    %46 = arith.truncf %45 : vector<16x128xf32> to vector<16x128xbf16>
    %c4 = arith.constant 4 : index
    %c0_19 = arith.constant 0 : index
    %c0_20 = arith.constant 0 : index
    %47 = vector.load %arg1[%c4, %c0_19, %c0_20] : memref<8x128x128xbf16, #tpu.memory_space<vmem>>, vector<1x128x128xbf16>
    %48 = vector.shape_cast %47 : vector<1x128x128xbf16> to vector<128x128xbf16>
    %cst_21 = arith.constant dense<0.000000e+00> : vector<16x128xf32>
    %49 = tpu.matmul %46, %48, %cst_21 {dimension_numbers = #tpu.dot_dimension_numbers<[1], [0], [0], [1], [0, 0, 1, 1], [], []>} : vector<16x128xbf16>, vector<128x128xbf16>, vector<16x128xf32> -> vector<16x128xf32>
    %50 = vector.extract_strided_slice %1 {offsets = [4, 0], sizes = [1, 128], strides = [1, 1]} : vector<8x128xf32> to vector<1x128xf32>
    %51 = vector.shape_cast %50 : vector<1x128xf32> to vector<128xf32>
    %52 = vector.shape_cast %51 : vector<128xf32> to vector<1x128xf32>
    %53 = vector.broadcast %52 : vector<1x128xf32> to vector<16x128xf32>
    %54 = arith.addf %49, %53 : vector<16x128xf32>
    %cst_22 = arith.constant 0.000000e+00 : f32
    %55 = vector.broadcast %cst_22 : f32 to vector<16x128xf32>
    %56 = arith.maximumf %54, %55 : vector<16x128xf32>
    %57 = arith.truncf %56 : vector<16x128xf32> to vector<16x128xbf16>
    %c5 = arith.constant 5 : index
    %c0_23 = arith.constant 0 : index
    %c0_24 = arith.constant 0 : index
    %58 = vector.load %arg1[%c5, %c0_23, %c0_24] : memref<8x128x128xbf16, #tpu.memory_space<vmem>>, vector<1x128x128xbf16>
    %59 = vector.shape_cast %58 : vector<1x128x128xbf16> to vector<128x128xbf16>
    %cst_25 = arith.constant dense<0.000000e+00> : vector<16x128xf32>
    %60 = tpu.matmul %57, %59, %cst_25 {dimension_numbers = #tpu.dot_dimension_numbers<[1], [0], [0], [1], [0, 0, 1, 1], [], []>} : vector<16x128xbf16>, vector<128x128xbf16>, vector<16x128xf32> -> vector<16x128xf32>
    %61 = vector.extract_strided_slice %1 {offsets = [5, 0], sizes = [1, 128], strides = [1, 1]} : vector<8x128xf32> to vector<1x128xf32>
    %62 = vector.shape_cast %61 : vector<1x128xf32> to vector<128xf32>
    %63 = vector.shape_cast %62 : vector<128xf32> to vector<1x128xf32>
    %64 = vector.broadcast %63 : vector<1x128xf32> to vector<16x128xf32>
    %65 = arith.addf %60, %64 : vector<16x128xf32>
    %cst_26 = arith.constant 0.000000e+00 : f32
    %66 = vector.broadcast %cst_26 : f32 to vector<16x128xf32>
    %67 = arith.maximumf %65, %66 : vector<16x128xf32>
    %68 = arith.truncf %67 : vector<16x128xf32> to vector<16x128xbf16>
    %c6 = arith.constant 6 : index
    %c0_27 = arith.constant 0 : index
    %c0_28 = arith.constant 0 : index
    %69 = vector.load %arg1[%c6, %c0_27, %c0_28] : memref<8x128x128xbf16, #tpu.memory_space<vmem>>, vector<1x128x128xbf16>
    %70 = vector.shape_cast %69 : vector<1x128x128xbf16> to vector<128x128xbf16>
    %cst_29 = arith.constant dense<0.000000e+00> : vector<16x128xf32>
    %71 = tpu.matmul %68, %70, %cst_29 {dimension_numbers = #tpu.dot_dimension_numbers<[1], [0], [0], [1], [0, 0, 1, 1], [], []>} : vector<16x128xbf16>, vector<128x128xbf16>, vector<16x128xf32> -> vector<16x128xf32>
    %72 = vector.extract_strided_slice %1 {offsets = [6, 0], sizes = [1, 128], strides = [1, 1]} : vector<8x128xf32> to vector<1x128xf32>
    %73 = vector.shape_cast %72 : vector<1x128xf32> to vector<128xf32>
    %74 = vector.shape_cast %73 : vector<128xf32> to vector<1x128xf32>
    %75 = vector.broadcast %74 : vector<1x128xf32> to vector<16x128xf32>
    %76 = arith.addf %71, %75 : vector<16x128xf32>
    %cst_30 = arith.constant 0.000000e+00 : f32
    %77 = vector.broadcast %cst_30 : f32 to vector<16x128xf32>
    %78 = arith.maximumf %76, %77 : vector<16x128xf32>
    %79 = arith.truncf %78 : vector<16x128xf32> to vector<16x128xbf16>
    %c7 = arith.constant 7 : index
    %c0_31 = arith.constant 0 : index
    %c0_32 = arith.constant 0 : index
    %80 = vector.load %arg1[%c7, %c0_31, %c0_32] : memref<8x128x128xbf16, #tpu.memory_space<vmem>>, vector<1x128x128xbf16>
    %81 = vector.shape_cast %80 : vector<1x128x128xbf16> to vector<128x128xbf16>
    %cst_33 = arith.constant dense<0.000000e+00> : vector<16x128xf32>
    %82 = tpu.matmul %79, %81, %cst_33 {dimension_numbers = #tpu.dot_dimension_numbers<[1], [0], [0], [1], [0, 0, 1, 1], [], []>} : vector<16x128xbf16>, vector<128x128xbf16>, vector<16x128xf32> -> vector<16x128xf32>
    %83 = vector.extract_strided_slice %1 {offsets = [7, 0], sizes = [1, 128], strides = [1, 1]} : vector<8x128xf32> to vector<1x128xf32>
    %84 = vector.shape_cast %83 : vector<1x128xf32> to vector<128xf32>
    %85 = vector.shape_cast %84 : vector<128xf32> to vector<1x128xf32>
    %86 = vector.broadcast %85 : vector<1x128xf32> to vector<16x128xf32>
    %87 = arith.addf %82, %86 : vector<16x128xf32>
    %cst_34 = arith.constant 0.000000e+00 : f32
    %88 = vector.broadcast %cst_34 : f32 to vector<16x128xf32>
    %89 = arith.maximumf %87, %88 : vector<16x128xf32>
    %c0_35 = arith.constant 0 : index
    %c0_36 = arith.constant 0 : index
    %90 = vector.load %arg3[%c0_35, %c0_36] : memref<16x128xf32, #tpu.memory_space<vmem>>, vector<16x128xf32>
    tpu.vector_store %arg3[%c0_35, %c0_36], %89 {strides = array<i32>} : memref<16x128xf32, #tpu.memory_space<vmem>>, vector<16x128xf32>,
    return
  }
}

</mosaic_0001>

<llo_original>
// kernel: fine_tuning_forward.1
$region0: #{fine_tuning_forward.1}
  #allocation0 [shape = 'u32[]', space=smem, size = 0x4, offset = 0x4, fixed_abs, tag = 'smem constant byte address 0x4 - core index']
  #allocation1 [shape = 'u32[144,128]{1,0:T(1,128)}', space=vmem, size = 0x12000, scoped, tag = 'internal scratch']
  %s0 = inlined_call_operand.vmem [shape: f32[16,128], index: 0, kind: input, shape index: {}]
  %s1 = inlined_call_operand.hbm [shape: bf16[8,128,128], index: 1, kind: input, shape index: {}]
  %s2 = inlined_call_operand.vmem [shape: f32[8,128], index: 2, kind: input, shape index: {}]
  %s3 = inlined_call_operand.vmem [shape: f32[16,128], index: 3, kind: output, shape index: {}]
  %s4 = sld [smem:[#allocation0]]
  $region26: #{fine_tuning_forward.1} parent=0
    _
  %s6 = ssub.s32 1, %s4
  %s7 = scalar_select 0, %s6, %s4
  $region1: #{fine_tuning_forward.1} parent=0
    #allocation2 [shape = 'u8[262144]{0}', space=vmem, size = 0x40000, scoped, tag = 'input window, operand 1, single buffered']
    #allocation3 [shape = 's32[1]{0}', space=sflag, size = 0x4, scoped, tag = 'scoped memory for fine_tuning_forward.1']
    %8 = vsyncpa [#allocation3], 0
    // Predicated region
    $region2: #{fine_tuning_forward.1} parent=1 // pred_check
      _
    $region3: #{fine_tuning_forward.1} parent=1 // pred_check_branch
      %10 = sbr.rel (0) target = $region5
    $region4: #{fine_tuning_forward.1} parent=1 // pred_region
      _
    $region5: #{fine_tuning_forward.1} parent=1 // pred_fallthru
      _
    // Predicated region
    $region6: #{fine_tuning_forward.1} parent=1 // pred_check
      _
    $region7: #{fine_tuning_forward.1} parent=1 // pred_check_branch
      %12 = sbr.rel (0) target = $region9
    $region8: #{fine_tuning_forward.1} parent=1 // pred_region
      %s14 = ssub.s32 8192, 8192
      %15 = vsyncadd [#allocation3], %s14
      %s16 = sshll.u32 [#allocation2], 4
      %s17 = int_to_ptr.vmem [resolvable:$true] %s16
      %22 = dma.hbm_to_vmem [thread:$0]  %s1, 8192, %s17, [#allocation3], 64, 64, 4
    $region9: #{fine_tuning_forward.1} parent=1 // pred_fallthru
      _
    // Predicated region
    $region10: #{fine_tuning_forward.1} parent=1 // pred_check
      _
    $region11: #{fine_tuning_forward.1} parent=1 // pred_check_branch
      %24 = sbr.rel (0) target = $region13
    $region12: #{fine_tuning_forward.1} parent=1 // pred_region
      _
    $region13: #{fine_tuning_forward.1} parent=1 // pred_fallthru
      _
    // Predicated region
    $region14: #{fine_tuning_forward.1} parent=1 // pred_check
      _
    $region15: #{fine_tuning_forward.1} parent=1 // pred_check_branch
      %26 = sbr.rel (0) target = $region17
    $region16: #{fine_tuning_forward.1} parent=1 // pred_region
      %27 = dma.done [#allocation3], 8192
    $region17: #{fine_tuning_forward.1} parent=1 // pred_fallthru
      _
    %v29 = vld [vmem:[%s0] sm:$0xff]
    %v30 = vld [vmem:[%s0 + $0x8] sm:$0xff]
    %v31 = vld [vmem:[%s2] sm:$0xff]
    %v32 = vpack.c.bf16 %v30, %v29
    %v33 = vld [vmem:[#allocation2] sm:$0xf]
    %v34 = vld [vmem:[#allocation2 + $0x4] sm:$0xf]
    %v35 = vld [vmem:[#allocation2 + $0x8] sm:$0xf]
    %v36 = vld [vmem:[#allocation2 + $0xc] sm:$0xf]
    %v37 = vld [vmem:[#allocation2 + $0x10] sm:$0xf]
    %v38 = vld [vmem:[#allocation2 + $0x14] sm:$0xf]
    %v39 = vld [vmem:[#allocation2 + $0x18] sm:$0xf]
    %v40 = vld [vmem:[#allocation2 + $0x1c] sm:$0xf]
    %v41 = vld [vmem:[#allocation2 + $0x20] sm:$0xf]
    %v42 = vld [vmem:[#allocation2 + $0x24] sm:$0xf]
    %v43 = vld [vmem:[#allocation2 + $0x28] sm:$0xf]
    %v44 = vld [vmem:[#allocation2 + $0x2c] sm:$0xf]
    %v45 = vld [vmem:[#allocation2 + $0x30] sm:$0xf]
    %v46 = vld [vmem:[#allocation2 + $0x34] sm:$0xf]
    %v47 = vld [vmem:[#allocation2 + $0x38] sm:$0xf]
    %v48 = vld [vmem:[#allocation2 + $0x3c] sm:$0xf]
    %v49 = vlaneseq
    %v50 = vshrl.u32 %v49, 7
    %v51 = vsub.s32 0, %v50
    %v52 = vrot.slane %v31, %v51
    %v69 = vunpack.c.l.b16 %v33
    %v70 = vunpack.c.l.b16 %v34
    %v71 = vunpack.c.l.b16 %v35
    %v72 = vunpack.c.l.b16 %v36
    %v73 = vunpack.c.l.b16 %v37
    %v74 = vunpack.c.l.b16 %v38
    %v75 = vunpack.c.l.b16 %v39
    %v76 = vunpack.c.l.b16 %v40
    %v77 = vunpack.c.l.b16 %v41
    %v78 = vunpack.c.l.b16 %v42
    %v79 = vunpack.c.l.b16 %v43
    %v80 = vunpack.c.l.b16 %v44
    %v81 = vunpack.c.l.b16 %v45
    %v82 = vunpack.c.l.b16 %v46
    %v83 = vunpack.c.l.b16 %v47
    %v84 = vunpack.c.l.b16 %v48
    %v85 = vpack.c.b16 %v70, %v69
    %v86 = vpack.c.b16 %v72, %v71
    %v87 = vpack.c.b16 %v74, %v73
    %v88 = vpack.c.b16 %v76, %v75
    %v89 = vpack.c.b16 %v78, %v77
    %v90 = vpack.c.b16 %v80, %v79
    %v91 = vpack.c.b16 %v82, %v81
    %v92 = vpack.c.b16 %v84, %v83
    %101 = vmatprep.subr.bf16.mxu0 0
    %102 = vmatpush1.bf16.msra.mxu0 %v85
    %103 = vmatprep.subr.bf16.mxu0 0
    %104 = vmatpush1.bf16.msra.mxu0 %v86
    %105 = vmatprep.subr.bf16.mxu0 0
    %106 = vmatpush1.bf16.msra.mxu0 %v87
    %107 = vmatprep.subr.bf16.mxu0 0
    %108 = vmatpush1.bf16.msra.mxu0 %v88
    %109 = vmatprep.subr.bf16.mxu0 0
    %110 = vmatpush1.bf16.msra.mxu0 %v89
    %111 = vmatprep.subr.bf16.mxu0 0
    %112 = vmatpush1.bf16.msra.mxu0 %v90
    %113 = vmatprep.subr.bf16.mxu0 0
    %114 = vmatpush1.bf16.msra.mxu0 %v91
    %115 = vmatprep.subr.bf16.mxu0 0
    %116 = vmatpush1.bf16.msra.mxu0 %v92
    %117 = vmatprep.subr.bf16.mxu0 0
    %118 = vmatpush1.bf16.msra.mxu0 0
    %119 = vmatprep.subr.bf16.mxu0 0
    %120 = vmatpush1.bf16.msra.mxu0 0
    %121 = vmatprep.subr.bf16.mxu0 0
    %122 = vmatpush1.bf16.msra.mxu0 0
    %123 = vmatprep.subr.bf16.mxu0 0
    %124 = vmatpush1.bf16.msra.mxu0 0
    %125 = vmatprep.subr.bf16.mxu0 0
    %126 = vmatpush1.bf16.msra.mxu0 0
    %127 = vmatprep.subr.bf16.mxu0 0
    %128 = vmatpush1.bf16.msra.mxu0 0
    %129 = vmatprep.subr.bf16.mxu0 0
    %130 = vmatpush1.bf16.msra.mxu0 0
    %131 = vmatprep.subr.bf16.mxu0 0
    %132 = vmatpush1.bf16.msra.mxu0 0
    %133 = vmatprep.mubr.bf16.mxu0 0
    %134 = vmatmul.mubr.bf16.gmra.mrb[0].mxu0 %v32
    %v135 = vpop.f32.mrb[0].mxu0
    %v136 = vadd.f32 %v52, %v135
    %v137 = vpop.f32.mrb[0].mxu0
    %v138 = vpop.f32.mrb[0].mxu0
    %v139 = vadd.f32 %v52, %v138
    %v140 = vpop.f32.mrb[0].mxu0
    %141 = vdwg.mxu0
    %v142 = vmax.f32 %v136, 0.0
    %v143 = vmax.f32 %v139, 0.0
    %v144 = vpack.c.bf16 %v143, %v142
    %s145 = scalar_lea.vmem [#allocation2], 64
    %v146 = vld [vmem:[%s145] sm:$0xf]
    %v147 = vld [vmem:[%s145 + $0x4] sm:$0xf]
    %v148 = vld [vmem:[%s145 + $0x8] sm:$0xf]
    %v149 = vld [vmem:[%s145 + $0xc] sm:$0xf]
    %v150 = vld [vmem:[%s145 + $0x10] sm:$0xf]
    %v151 = vld [vmem:[%s145 + $0x14] sm:$0xf]
    %v152 = vld [vmem:[%s145 + $0x18] sm:$0xf]
    %v153 = vld [vmem:[%s145 + $0x1c] sm:$0xf]
    %v154 = vld [vmem:[%s145 + $0x20] sm:$0xf]
    %v155 = vld [vmem:[%s145 + $0x24] sm:$0xf]
    %v156 = vld [vmem:[%s145 + $0x28] sm:$0xf]
    %v157 = vld [vmem:[%s145 + $0x2c] sm:$0xf]
    %v158 = vld [vmem:[%s145 + $0x30] sm:$0xf]
    %v159 = vld [vmem:[%s145 + $0x34] sm:$0xf]
    %v160 = vld [vmem:[%s145 + $0x38] sm:$0xf]
    %v161 = vld [vmem:[%s145 + $0x3c] sm:$0xf]
    %v162 = vlaneseq
    %v163 = vshrl.u32 %v162, 7
    %v164 = vsub.s32 1, %v163
    %v165 = vrot.slane %v31, %v164
    %v182 = vunpack.c.l.b16 %v146
    %v183 = vunpack.c.l.b16 %v147
    %v184 = vunpack.c.l.b16 %v148
    %v185 = vunpack.c.l.b16 %v149
    %v186 = vunpack.c.l.b16 %v150
    %v187 = vunpack.c.l.b16 %v151
    %v188 = vunpack.c.l.b16 %v152
    %v189 = vunpack.c.l.b16 %v153
    %v190 = vunpack.c.l.b16 %v154
    %v191 = vunpack.c.l.b16 %v155
    %v192 = vunpack.c.l.b16 %v156
    %v193 = vunpack.c.l.b16 %v157
    %v194 = vunpack.c.l.b16 %v158
    %v195 = vunpack.c.l.b16 %v159
    %v196 = vunpack.c.l.b16 %v160
    %v197 = vunpack.c.l.b16 %v161
    %v198 = vpack.c.b16 %v183, %v182
    %v199 = vpack.c.b16 %v185, %v184
    %v200 = vpack.c.b16 %v187, %v186
    %v201 = vpack.c.b16 %v189, %v188
    %v202 = vpack.c.b16 %v191, %v190
    %v203 = vpack.c.b16 %v193, %v192
    %v204 = vpack.c.b16 %v195, %v194
    %v205 = vpack.c.b16 %v197, %v196
    %214 = vmatprep.subr.bf16.mxu0 0
    %215 = vmatpush1.bf16.msra.mxu0 %v198
    %216 = vmatprep.subr.bf16.mxu0 0
    %217 = vmatpush1.bf16.msra.mxu0 %v199
    %218 = vmatprep.subr.bf16.mxu0 0
    %219 = vmatpush1.bf16.msra.mxu0 %v200
    %220 = vmatprep.subr.bf16.mxu0 0
    %221 = vmatpush1.bf16.msra.mxu0 %v201
    %222 = vmatprep.subr.bf16.mxu0 0
    %223 = vmatpush1.bf16.msra.mxu0 %v202
    %224 = vmatprep.subr.bf16.mxu0 0
    %225 = vmatpush1.bf16.msra.mxu0 %v203
    %226 = vmatprep.subr.bf16.mxu0 0
    %227 = vmatpush1.bf16.msra.mxu0 %v204
    %228 = vmatprep.subr.bf16.mxu0 0
    %229 = vmatpush1.bf16.msra.mxu0 %v205
    %230 = vmatprep.subr.bf16.mxu0 0
    %231 = vmatpush1.bf16.msra.mxu0 0
    %232 = vmatprep.subr.bf16.mxu0 0
    %233 = vmatpush1.bf16.msra.mxu0 0
    %234 = vmatprep.subr.bf16.mxu0 0
    %235 = vmatpush1.bf16.msra.mxu0 0
    %236 = vmatprep.subr.bf16.mxu0 0
    %237 = vmatpush1.bf16.msra.mxu0 0
    %238 = vmatprep.subr.bf16.mxu0 0
    %239 = vmatpush1.bf16.msra.mxu0 0
    %240 = vmatprep.subr.bf16.mxu0 0
    %241 = vmatpush1.bf16.msra.mxu0 0
    %242 = vmatprep.subr.bf16.mxu0 0
    %243 = vmatpush1.bf16.msra.mxu0 0
    %244 = vmatprep.subr.bf16.mxu0 0
    %245 = vmatpush1.bf16.msra.mxu0 0
    %246 = vmatprep.mubr.bf16.mxu0 0
    %247 = vmatmul.mubr.bf16.gmra.mrb[0].mxu0 %v144
    %v248 = vpop.f32.mrb[0].mxu0
    %v249 = vadd.f32 %v165, %v248
    %v250 = vpop.f32.mrb[0].mxu0
    %v251 = vpop.f32.mrb[0].mxu0
    %v252 = vadd.f32 %v165, %v251
    %v253 = vpop.f32.mrb[0].mxu0
    %254 = vdwg.mxu0
    %v255 = vmax.f32 %v249, 0.0
    %v256 = vmax.f32 %v252, 0.0
    %v257 = vpack.c.bf16 %v256, %v255
    %s258 = scalar_lea.vmem [#allocation2], 128
    %v259 = vld [vmem:[%s258] sm:$0xf]
    %v260 = vld [vmem:[%s258 + $0x4] sm:$0xf]
    %v261 = vld [vmem:[%s258 + $0x8] sm:$0xf]
    %v262 = vld [vmem:[%s258 + $0xc] sm:$0xf]
    %v263 = vld [vmem:[%s258 + $0x10] sm:$0xf]
    %v264 = vld [vmem:[%s258 + $0x14] sm:$0xf]
    %v265 = vld [vmem:[%s258 + $0x18] sm:$0xf]
    %v266 = vld [vmem:[%s258 + $0x1c] sm:$0xf]
    %v267 = vld [vmem:[%s258 + $0x20] sm:$0xf]
    %v268 = vld [vmem:[%s258 + $0x24] sm:$0xf]
    %v269 = vld [vmem:[%s258 + $0x28] sm:$0xf]
    %v270 = vld [vmem:[%s258 + $0x2c] sm:$0xf]
    %v271 = vld [vmem:[%s258 + $0x30] sm:$0xf]
    %v272 = vld [vmem:[%s258 + $0x34] sm:$0xf]
    %v273 = vld [vmem:[%s258 + $0x38] sm:$0xf]
    %v274 = vld [vmem:[%s258 + $0x3c] sm:$0xf]
    %v275 = vlaneseq
    %v276 = vshrl.u32 %v275, 7
    %v277 = vsub.s32 2, %v276
    %v278 = vrot.slane %v31, %v277
    %v295 = vunpack.c.l.b16 %v259
    %v296 = vunpack.c.l.b16 %v260
    %v297 = vunpack.c.l.b16 %v261
    %v298 = vunpack.c.l.b16 %v262
    %v299 = vunpack.c.l.b16 %v263
    %v300 = vunpack.c.l.b16 %v264
    %v301 = vunpack.c.l.b16 %v265
    %v302 = vunpack.c.l.b16 %v266
    %v303 = vunpack.c.l.b16 %v267
    %v304 = vunpack.c.l.b16 %v268
    %v305 = vunpack.c.l.b16 %v269
    %v306 = vunpack.c.l.b16 %v270
    %v307 = vunpack.c.l.b16 %v271
    %v308 = vunpack.c.l.b16 %v272
    %v309 = vunpack.c.l.b16 %v273
    %v310 = vunpack.c.l.b16 %v274
    %v311 = vpack.c.b16 %v296, %v295
    %v312 = vpack.c.b16 %v298, %v297
    %v313 = vpack.c.b16 %v300, %v299
    %v314 = vpack.c.b16 %v302, %v301
    %v315 = vpack.c.b16 %v304, %v303
    %v316 = vpack.c.b16 %v306, %v305
    %v317 = vpack.c.b16 %v308, %v307
    %v318 = vpack.c.b16 %v310, %v309
    %327 = vmatprep.subr.bf16.mxu0 0
    %328 = vmatpush1.bf16.msra.mxu0 %v311
    %329 = vmatprep.subr.bf16.mxu0 0
    %330 = vmatpush1.bf16.msra.mxu0 %v312
    %331 = vmatprep.subr.bf16.mxu0 0
    %332 = vmatpush1.bf16.msra.mxu0 %v313
    %333 = vmatprep.subr.bf16.mxu0 0
    %334 = vmatpush1.bf16.msra.mxu0 %v314
    %335 = vmatprep.subr.bf16.mxu0 0
    %336 = vmatpush1.bf16.msra.mxu0 %v315
    %337 = vmatprep.subr.bf16.mxu0 0
    %338 = vmatpush1.bf16.msra.mxu0 %v316
    %339 = vmatprep.subr.bf16.mxu0 0
    %340 = vmatpush1.bf16.msra.mxu0 %v317
    %341 = vmatprep.subr.bf16.mxu0 0
    %342 = vmatpush1.bf16.msra.mxu0 %v318
    %343 = vmatprep.subr.bf16.mxu0 0
    %344 = vmatpush1.bf16.msra.mxu0 0
    %345 = vmatprep.subr.bf16.mxu0 0
    %346 = vmatpush1.bf16.msra.mxu0 0
    %347 = vmatprep.subr.bf16.mxu0 0
    %348 = vmatpush1.bf16.msra.mxu0 0
    %349 = vmatprep.subr.bf16.mxu0 0
    %350 = vmatpush1.bf16.msra.mxu0 0
    %351 = vmatprep.subr.bf16.mxu0 0
    %352 = vmatpush1.bf16.msra.mxu0 0
    %353 = vmatprep.subr.bf16.mxu0 0
    %354 = vmatpush1.bf16.msra.mxu0 0
    %355 = vmatprep.subr.bf16.mxu0 0
    %356 = vmatpush1.bf16.msra.mxu0 0
    %357 = vmatprep.subr.bf16.mxu0 0
    %358 = vmatpush1.bf16.msra.mxu0 0
    %359 = vmatprep.mubr.bf16.mxu0 0
    %360 = vmatmul.mubr.bf16.gmra.mrb[0].mxu0 %v257
    %v361 = vpop.f32.mrb[0].mxu0
    %v362 = vadd.f32 %v278, %v361
    %v363 = vpop.f32.mrb[0].mxu0
    %v364 = vpop.f32.mrb[0].mxu0
    %v365 = vadd.f32 %v278, %v364
    %v366 = vpop.f32.mrb[0].mxu0
    %367 = vdwg.mxu0
    %v368 = vmax.f32 %v362, 0.0
    %v369 = vmax.f32 %v365, 0.0
    %v370 = vpack.c.bf16 %v369, %v368
    %s371 = scalar_lea.vmem [#allocation2], 192
    %v372 = vld [vmem:[%s371] sm:$0xf]
    %v373 = vld [vmem:[%s371 + $0x4] sm:$0xf]
    %v374 = vld [vmem:[%s371 + $0x8] sm:$0xf]
    %v375 = vld [vmem:[%s371 + $0xc] sm:$0xf]
    %v376 = vld [vmem:[%s371 + $0x10] sm:$0xf]
    %v377 = vld [vmem:[%s371 + $0x14] sm:$0xf]
    %v378 = vld [vmem:[%s371 + $0x18] sm:$0xf]
    %v379 = vld [vmem:[%s371 + $0x1c] sm:$0xf]
    %v380 = vld [vmem:[%s371 + $0x20] sm:$0xf]
    %v381 = vld [vmem:[%s371 + $0x24] sm:$0xf]
    %v382 = vld [vmem:[%s371 + $0x28] sm:$0xf]
    %v383 = vld [vmem:[%s371 + $0x2c] sm:$0xf]
    %v384 = vld [vmem:[%s371 + $0x30] sm:$0xf]
    %v385 = vld [vmem:[%s371 + $0x34] sm:$0xf]
    %v386 = vld [vmem:[%s371 + $0x38] sm:$0xf]
    %v387 = vld [vmem:[%s371 + $0x3c] sm:$0xf]
    %v388 = vlaneseq
    %v389 = vshrl.u32 %v388, 7
    %v390 = vsub.s32 3, %v389
    %v391 = vrot.slane %v31, %v390
    %v408 = vunpack.c.l.b16 %v372
    %v409 = vunpack.c.l.b16 %v373
    %v410 = vunpack.c.l.b16 %v374
    %v411 = vunpack.c.l.b16 %v375
    %v412 = vunpack.c.l.b16 %v376
    %v413 = vunpack.c.l.b16 %v377
    %v414 = vunpack.c.l.b16 %v378
    %v415 = vunpack.c.l.b16 %v379
    %v416 = vunpack.c.l.b16 %v380
    %v417 = vunpack.c.l.b16 %v381
    %v418 = vunpack.c.l.b16 %v382
    %v419 = vunpack.c.l.b16 %v383
    %v420 = vunpack.c.l.b16 %v384
    %v421 = vunpack.c.l.b16 %v385
    %v422 = vunpack.c.l.b16 %v386
    %v423 = vunpack.c.l.b16 %v387
    %v424 = vpack.c.b16 %v409, %v408
    %v425 = vpack.c.b16 %v411, %v410
    %v426 = vpack.c.b16 %v413, %v412
    %v427 = vpack.c.b16 %v415, %v414
    %v428 = vpack.c.b16 %v417, %v416
    %v429 = vpack.c.b16 %v419, %v418
    %v430 = vpack.c.b16 %v421, %v420
    %v431 = vpack.c.b16 %v423, %v422
    %440 = vmatprep.subr.bf16.mxu0 0
    %441 = vmatpush1.bf16.msra.mxu0 %v424
    %442 = vmatprep.subr.bf16.mxu0 0
    %443 = vmatpush1.bf16.msra.mxu0 %v425
    %444 = vmatprep.subr.bf16.mxu0 0
    %445 = vmatpush1.bf16.msra.mxu0 %v426
    %446 = vmatprep.subr.bf16.mxu0 0
    %447 = vmatpush1.bf16.msra.mxu0 %v427
    %448 = vmatprep.subr.bf16.mxu0 0
    %449 = vmatpush1.bf16.msra.mxu0 %v428
    %450 = vmatprep.subr.bf16.mxu0 0
    %451 = vmatpush1.bf16.msra.mxu0 %v429
    %452 = vmatprep.subr.bf16.mxu0 0
    %453 = vmatpush1.bf16.msra.mxu0 %v430
    %454 = vmatprep.subr.bf16.mxu0 0
    %455 = vmatpush1.bf16.msra.mxu0 %v431
    %456 = vmatprep.subr.bf16.mxu0 0
    %457 = vmatpush1.bf16.msra.mxu0 0
    %458 = vmatprep.subr.bf16.mxu0 0
    %459 = vmatpush1.bf16.msra.mxu0 0
    %460 = vmatprep.subr.bf16.mxu0 0
    %461 = vmatpush1.bf16.msra.mxu0 0
    %462 = vmatprep.subr.bf16.mxu0 0
    %463 = vmatpush1.bf16.msra.mxu0 0
    %464 = vmatprep.subr.bf16.mxu0 0
    %465 = vmatpush1.bf16.msra.mxu0 0
    %466 = vmatprep.subr.bf16.mxu0 0
    %467 = vmatpush1.bf16.msra.mxu0 0
    %468 = vmatprep.subr.bf16.mxu0 0
    %469 = vmatpush1.bf16.msra.mxu0 0
    %470 = vmatprep.subr.bf16.mxu0 0
    %471 = vmatpush1.bf16.msra.mxu0 0
    %472 = vmatprep.mubr.bf16.mxu0 0
    %473 = vmatmul.mubr.bf16.gmra.mrb[0].mxu0 %v370
    %v474 = vpop.f32.mrb[0].mxu0
    %v475 = vadd.f32 %v391, %v474
    %v476 = vpop.f32.mrb[0].mxu0
    %v477 = vpop.f32.mrb[0].mxu0
    %v478 = vadd.f32 %v391, %v477
    %v479 = vpop.f32.mrb[0].mxu0
    %480 = vdwg.mxu0
    %v481 = vmax.f32 %v475, 0.0
    %v482 = vmax.f32 %v478, 0.0
    %v483 = vpack.c.bf16 %v482, %v481
    %s484 = scalar_lea.vmem [#allocation2], 256
    %v485 = vld [vmem:[%s484] sm:$0xf]
    %v486 = vld [vmem:[%s484 + $0x4] sm:$0xf]
    %v487 = vld [vmem:[%s484 + $0x8] sm:$0xf]
    %v488 = vld [vmem:[%s484 + $0xc] sm:$0xf]
    %v489 = vld [vmem:[%s484 + $0x10] sm:$0xf]
    %v490 = vld [vmem:[%s484 + $0x14] sm:$0xf]
    %v491 = vld [vmem:[%s484 + $0x18] sm:$0xf]
    %v492 = vld [vmem:[%s484 + $0x1c] sm:$0xf]
    %v493 = vld [vmem:[%s484 + $0x20] sm:$0xf]
    %v494 = vld [vmem:[%s484 + $0x24] sm:$0xf]
    %v495 = vld [vmem:[%s484 + $0x28] sm:$0xf]
    %v496 = vld [vmem:[%s484 + $0x2c] sm:$0xf]
    %v497 = vld [vmem:[%s484 + $0x30] sm:$0xf]
    %v498 = vld [vmem:[%s484 + $0x34] sm:$0xf]
    %v499 = vld [vmem:[%s484 + $0x38] sm:$0xf]
    %v500 = vld [vmem:[%s484 + $0x3c] sm:$0xf]
    %v501 = vlaneseq
    %v502 = vshrl.u32 %v501, 7
    %v503 = vsub.s32 4, %v502
    %v504 = vrot.slane %v31, %v503
    %v521 = vunpack.c.l.b16 %v485
    %v522 = vunpack.c.l.b16 %v486
    %v523 = vunpack.c.l.b16 %v487
    %v524 = vunpack.c.l.b16 %v488
    %v525 = vunpack.c.l.b16 %v489
    %v526 = vunpack.c.l.b16 %v490
    %v527 = vunpack.c.l.b16 %v491
    %v528 = vunpack.c.l.b16 %v492
    %v529 = vunpack.c.l.b16 %v493
    %v530 = vunpack.c.l.b16 %v494
    %v531 = vunpack.c.l.b16 %v495
    %v532 = vunpack.c.l.b16 %v496
    %v533 = vunpack.c.l.b16 %v497
    %v534 = vunpack.c.l.b16 %v498
    %v535 = vunpack.c.l.b16 %v499
    %v536 = vunpack.c.l.b16 %v500
    %v537 = vpack.c.b16 %v522, %v521
    %v538 = vpack.c.b16 %v524, %v523
    %v539 = vpack.c.b16 %v526, %v525
    %v540 = vpack.c.b16 %v528, %v527
    %v541 = vpack.c.b16 %v530, %v529
    %v542 = vpack.c.b16 %v532, %v531
    %v543 = vpack.c.b16 %v534, %v533
    %v544 = vpack.c.b16 %v536, %v535
    %553 = vmatprep.subr.bf16.mxu0 0
    %554 = vmatpush1.bf16.msra.mxu0 %v537
    %555 = vmatprep.subr.bf16.mxu0 0
    %556 = vmatpush1.bf16.msra.mxu0 %v538
    %557 = vmatprep.subr.bf16.mxu0 0
    %558 = vmatpush1.bf16.msra.mxu0 %v539
    %559 = vmatprep.subr.bf16.mxu0 0
    %560 = vmatpush1.bf16.msra.mxu0 %v540
    %561 = vmatprep.subr.bf16.mxu0 0
    %562 = vmatpush1.bf16.msra.mxu0 %v541
    %563 = vmatprep.subr.bf16.mxu0 0
    %564 = vmatpush1.bf16.msra.mxu0 %v542
    %565 = vmatprep.subr.bf16.mxu0 0
    %566 = vmatpush1.bf16.msra.mxu0 %v543
    %567 = vmatprep.subr.bf16.mxu0 0
    %568 = vmatpush1.bf16.msra.mxu0 %v544
    %569 = vmatprep.subr.bf16.mxu0 0
    %570 = vmatpush1.bf16.msra.mxu0 0
    %571 = vmatprep.subr.bf16.mxu0 0
    %572 = vmatpush1.bf16.msra.mxu0 0
    %573 = vmatprep.subr.bf16.mxu0 0
    %574 = vmatpush1.bf16.msra.mxu0 0
    %575 = vmatprep.subr.bf16.mxu0 0
    %576 = vmatpush1.bf16.msra.mxu0 0
    %577 = vmatprep.subr.bf16.mxu0 0
    %578 = vmatpush1.bf16.msra.mxu0 0
    %579 = vmatprep.subr.bf16.mxu0 0
    %580 = vmatpush1.bf16.msra.mxu0 0
    %581 = vmatprep.subr.bf16.mxu0 0
    %582 = vmatpush1.bf16.msra.mxu0 0
    %583 = vmatprep.subr.bf16.mxu0 0
    %584 = vmatpush1.bf16.msra.mxu0 0
    %585 = vmatprep.mubr.bf16.mxu0 0
    %586 = vmatmul.mubr.bf16.gmra.mrb[0].mxu0 %v483
    %v587 = vpop.f32.mrb[0].mxu0
    %v588 = vadd.f32 %v504, %v587
    %v589 = vpop.f32.mrb[0].mxu0
    %v590 = vpop.f32.mrb[0].mxu0
    %v591 = vadd.f32 %v504, %v590
    %v592 = vpop.f32.mrb[0].mxu0
    %593 = vdwg.mxu0
    %v594 = vmax.f32 %v588, 0.0
    %v595 = vmax.f32 %v591, 0.0
    %v596 = vpack.c.bf16 %v595, %v594
    %s597 = scalar_lea.vmem [#allocation2], 320
    %v598 = vld [vmem:[%s597] sm:$0xf]
    %v599 = vld [vmem:[%s597 + $0x4] sm:$0xf]
    %v600 = vld [vmem:[%s597 + $0x8] sm:$0xf]
    %v601 = vld [vmem:[%s597 + $0xc] sm:$0xf]
    %v602 = vld [vmem:[%s597 + $0x10] sm:$0xf]
    %v603 = vld [vmem:[%s597 + $0x14] sm:$0xf]
    %v604 = vld [vmem:[%s597 + $0x18] sm:$0xf]
    %v605 = vld [vmem:[%s597 + $0x1c] sm:$0xf]
    %v606 = vld [vmem:[%s597 + $0x20] sm:$0xf]
    %v607 = vld [vmem:[%s597 + $0x24] sm:$0xf]
    %v608 = vld [vmem:[%s597 + $0x28] sm:$0xf]
    %v609 = vld [vmem:[%s597 + $0x2c] sm:$0xf]
    %v610 = vld [vmem:[%s597 + $0x30] sm:$0xf]
    %v611 = vld [vmem:[%s597 + $0x34] sm:$0xf]
    %v612 = vld [vmem:[%s597 + $0x38] sm:$0xf]
    %v613 = vld [vmem:[%s597 + $0x3c] sm:$0xf]
    %v614 = vlaneseq
    %v615 = vshrl.u32 %v614, 7
    %v616 = vsub.s32 5, %v615
    %v617 = vrot.slane %v31, %v616
    %v634 = vunpack.c.l.b16 %v598
    %v635 = vunpack.c.l.b16 %v599
    %v636 = vunpack.c.l.b16 %v600
    %v637 = vunpack.c.l.b16 %v601
    %v638 = vunpack.c.l.b16 %v602
    %v639 = vunpack.c.l.b16 %v603
    %v640 = vunpack.c.l.b16 %v604
    %v641 = vunpack.c.l.b16 %v605
    %v642 = vunpack.c.l.b16 %v606
    %v643 = vunpack.c.l.b16 %v607
    %v644 = vunpack.c.l.b16 %v608
    %v645 = vunpack.c.l.b16 %v609
    %v646 = vunpack.c.l.b16 %v610
    %v647 = vunpack.c.l.b16 %v611
    %v648 = vunpack.c.l.b16 %v612
    %v649 = vunpack.c.l.b16 %v613
    %v650 = vpack.c.b16 %v635, %v634
    %v651 = vpack.c.b16 %v637, %v636
    %v652 = vpack.c.b16 %v639, %v638
    %v653 = vpack.c.b16 %v641, %v640
    %v654 = vpack.c.b16 %v643, %v642
    %v655 = vpack.c.b16 %v645, %v644
    %v656 = vpack.c.b16 %v647, %v646
    %v657 = vpack.c.b16 %v649, %v648
    %666 = vmatprep.subr.bf16.mxu0 0
    %667 = vmatpush1.bf16.msra.mxu0 %v650
    %668 = vmatprep.subr.bf16.mxu0 0
    %669 = vmatpush1.bf16.msra.mxu0 %v651
    %670 = vmatprep.subr.bf16.mxu0 0
    %671 = vmatpush1.bf16.msra.mxu0 %v652
    %672 = vmatprep.subr.bf16.mxu0 0
    %673 = vmatpush1.bf16.msra.mxu0 %v653
    %674 = vmatprep.subr.bf16.mxu0 0
    %675 = vmatpush1.bf16.msra.mxu0 %v654
    %676 = vmatprep.subr.bf16.mxu0 0
    %677 = vmatpush1.bf16.msra.mxu0 %v655
    %678 = vmatprep.subr.bf16.mxu0 0
    %679 = vmatpush1.bf16.msra.mxu0 %v656
    %680 = vmatprep.subr.bf16.mxu0 0
    %681 = vmatpush1.bf16.msra.mxu0 %v657
    %682 = vmatprep.subr.bf16.mxu0 0
    %683 = vmatpush1.bf16.msra.mxu0 0
    %684 = vmatprep.subr.bf16.mxu0 0
    %685 = vmatpush1.bf16.msra.mxu0 0
    %686 = vmatprep.subr.bf16.mxu0 0
    %687 = vmatpush1.bf16.msra.mxu0 0
    %688 = vmatprep.subr.bf16.mxu0 0
    %689 = vmatpush1.bf16.msra.mxu0 0
    %690 = vmatprep.subr.bf16.mxu0 0
    %691 = vmatpush1.bf16.msra.mxu0 0
    %692 = vmatprep.subr.bf16.mxu0 0
    %693 = vmatpush1.bf16.msra.mxu0 0
    %694 = vmatprep.subr.bf16.mxu0 0
    %695 = vmatpush1.bf16.msra.mxu0 0
    %696 = vmatprep.subr.bf16.mxu0 0
    %697 = vmatpush1.bf16.msra.mxu0 0
    %698 = vmatprep.mubr.bf16.mxu0 0
    %699 = vmatmul.mubr.bf16.gmra.mrb[0].mxu0 %v596
    %v700 = vpop.f32.mrb[0].mxu0
    %v701 = vadd.f32 %v617, %v700
    %v702 = vpop.f32.mrb[0].mxu0
    %v703 = vpop.f32.mrb[0].mxu0
    %v704 = vadd.f32 %v617, %v703
    %v705 = vpop.f32.mrb[0].mxu0
    %706 = vdwg.mxu0
    %v707 = vmax.f32 %v701, 0.0
    %v708 = vmax.f32 %v704, 0.0
    %v709 = vpack.c.bf16 %v708, %v707
    %s710 = scalar_lea.vmem [#allocation2], 384
    %v711 = vld [vmem:[%s710] sm:$0xf]
    %v712 = vld [vmem:[%s710 + $0x4] sm:$0xf]
    %v713 = vld [vmem:[%s710 + $0x8] sm:$0xf]
    %v714 = vld [vmem:[%s710 + $0xc] sm:$0xf]
    %v715 = vld [vmem:[%s710 + $0x10] sm:$0xf]
    %v716 = vld [vmem:[%s710 + $0x14] sm:$0xf]
    %v717 = vld [vmem:[%s710 + $0x18] sm:$0xf]
    %v718 = vld [vmem:[%s710 + $0x1c] sm:$0xf]
    %v719 = vld [vmem:[%s710 + $0x20] sm:$0xf]
    %v720 = vld [vmem:[%s710 + $0x24] sm:$0xf]
    %v721 = vld [vmem:[%s710 + $0x28] sm:$0xf]
    %v722 = vld [vmem:[%s710 + $0x2c] sm:$0xf]
    %v723 = vld [vmem:[%s710 + $0x30] sm:$0xf]
    %v724 = vld [vmem:[%s710 + $0x34] sm:$0xf]
    %v725 = vld [vmem:[%s710 + $0x38] sm:$0xf]
    %v726 = vld [vmem:[%s710 + $0x3c] sm:$0xf]
    %v727 = vlaneseq
    %v728 = vshrl.u32 %v727, 7
    %v729 = vsub.s32 6, %v728
    %v730 = vrot.slane %v31, %v729
    %v747 = vunpack.c.l.b16 %v711
    %v748 = vunpack.c.l.b16 %v712
    %v749 = vunpack.c.l.b16 %v713
    %v750 = vunpack.c.l.b16 %v714
    %v751 = vunpack.c.l.b16 %v715
    %v752 = vunpack.c.l.b16 %v716
    %v753 = vunpack.c.l.b16 %v717
    %v754 = vunpack.c.l.b16 %v718
    %v755 = vunpack.c.l.b16 %v719
    %v756 = vunpack.c.l.b16 %v720
    %v757 = vunpack.c.l.b16 %v721
    %v758 = vunpack.c.l.b16 %v722
    %v759 = vunpack.c.l.b16 %v723
    %v760 = vunpack.c.l.b16 %v724
    %v761 = vunpack.c.l.b16 %v725
    %v762 = vunpack.c.l.b16 %v726
    %v763 = vpack.c.b16 %v748, %v747
    %v764 = vpack.c.b16 %v750, %v749
    %v765 = vpack.c.b16 %v752, %v751
    %v766 = vpack.c.b16 %v754, %v753
    %v767 = vpack.c.b16 %v756, %v755
    %v768 = vpack.c.b16 %v758, %v757
    %v769 = vpack.c.b16 %v760, %v759
    %v770 = vpack.c.b16 %v762, %v761
    %779 = vmatprep.subr.bf16.mxu0 0
    %780 = vmatpush1.bf16.msra.mxu0 %v763
    %781 = vmatprep.subr.bf16.mxu0 0
    %782 = vmatpush1.bf16.msra.mxu0 %v764
    %783 = vmatprep.subr.bf16.mxu0 0
    %784 = vmatpush1.bf16.msra.mxu0 %v765
    %785 = vmatprep.subr.bf16.mxu0 0
    %786 = vmatpush1.bf16.msra.mxu0 %v766
    %787 = vmatprep.subr.bf16.mxu0 0
    %788 = vmatpush1.bf16.msra.mxu0 %v767
    %789 = vmatprep.subr.bf16.mxu0 0
    %790 = vmatpush1.bf16.msra.mxu0 %v768
    %791 = vmatprep.subr.bf16.mxu0 0
    %792 = vmatpush1.bf16.msra.mxu0 %v769
    %793 = vmatprep.subr.bf16.mxu0 0
    %794 = vmatpush1.bf16.msra.mxu0 %v770
    %795 = vmatprep.subr.bf16.mxu0 0
    %796 = vmatpush1.bf16.msra.mxu0 0
    %797 = vmatprep.subr.bf16.mxu0 0
    %798 = vmatpush1.bf16.msra.mxu0 0
    %799 = vmatprep.subr.bf16.mxu0 0
    %800 = vmatpush1.bf16.msra.mxu0 0
    %801 = vmatprep.subr.bf16.mxu0 0
    %802 = vmatpush1.bf16.msra.mxu0 0
    %803 = vmatprep.subr.bf16.mxu0 0
    %804 = vmatpush1.bf16.msra.mxu0 0
    %805 = vmatprep.subr.bf16.mxu0 0
    %806 = vmatpush1.bf16.msra.mxu0 0
    %807 = vmatprep.subr.bf16.mxu0 0
    %808 = vmatpush1.bf16.msra.mxu0 0
    %809 = vmatprep.subr.bf16.mxu0 0
    %810 = vmatpush1.bf16.msra.mxu0 0
    %811 = vmatprep.mubr.bf16.mxu0 0
    %812 = vmatmul.mubr.bf16.gmra.mrb[0].mxu0 %v709
    %v813 = vpop.f32.mrb[0].mxu0
    %v814 = vadd.f32 %v730, %v813
    %v815 = vpop.f32.mrb[0].mxu0
    %v816 = vpop.f32.mrb[0].mxu0
    %v817 = vadd.f32 %v730, %v816
    %v818 = vpop.f32.mrb[0].mxu0
    %819 = vdwg.mxu0
    %v820 = vmax.f32 %v814, 0.0
    %v821 = vmax.f32 %v817, 0.0
    %v822 = vpack.c.bf16 %v821, %v820
    %s823 = scalar_lea.vmem [#allocation2], 448
    %v824 = vld [vmem:[%s823] sm:$0xf]
    %v825 = vld [vmem:[%s823 + $0x4] sm:$0xf]
    %v826 = vld [vmem:[%s823 + $0x8] sm:$0xf]
    %v827 = vld [vmem:[%s823 + $0xc] sm:$0xf]
    %v828 = vld [vmem:[%s823 + $0x10] sm:$0xf]
    %v829 = vld [vmem:[%s823 + $0x14] sm:$0xf]
    %v830 = vld [vmem:[%s823 + $0x18] sm:$0xf]
    %v831 = vld [vmem:[%s823 + $0x1c] sm:$0xf]
    %v832 = vld [vmem:[%s823 + $0x20] sm:$0xf]
    %v833 = vld [vmem:[%s823 + $0x24] sm:$0xf]
    %v834 = vld [vmem:[%s823 + $0x28] sm:$0xf]
    %v835 = vld [vmem:[%s823 + $0x2c] sm:$0xf]
    %v836 = vld [vmem:[%s823 + $0x30] sm:$0xf]
    %v837 = vld [vmem:[%s823 + $0x34] sm:$0xf]
    %v838 = vld [vmem:[%s823 + $0x38] sm:$0xf]
    %v839 = vld [vmem:[%s823 + $0x3c] sm:$0xf]
    %v840 = vlaneseq
    %v841 = vshrl.u32 %v840, 7
    %v842 = vsub.s32 7, %v841
    %v843 = vrot.slane %v31, %v842
    %v860 = vunpack.c.l.b16 %v824
    %v861 = vunpack.c.l.b16 %v825
    %v862 = vunpack.c.l.b16 %v826
    %v863 = vunpack.c.l.b16 %v827
    %v864 = vunpack.c.l.b16 %v828
    %v865 = vunpack.c.l.b16 %v829
    %v866 = vunpack.c.l.b16 %v830
    %v867 = vunpack.c.l.b16 %v831
    %v868 = vunpack.c.l.b16 %v832
    %v869 = vunpack.c.l.b16 %v833
    %v870 = vunpack.c.l.b16 %v834
    %v871 = vunpack.c.l.b16 %v835
    %v872 = vunpack.c.l.b16 %v836
    %v873 = vunpack.c.l.b16 %v837
    %v874 = vunpack.c.l.b16 %v838
    %v875 = vunpack.c.l.b16 %v839
    %v876 = vpack.c.b16 %v861, %v860
    %v877 = vpack.c.b16 %v863, %v862
    %v878 = vpack.c.b16 %v865, %v864
    %v879 = vpack.c.b16 %v867, %v866
    %v880 = vpack.c.b16 %v869, %v868
    %v881 = vpack.c.b16 %v871, %v870
    %v882 = vpack.c.b16 %v873, %v872
    %v883 = vpack.c.b16 %v875, %v874
    %892 = vmatprep.subr.bf16.mxu0 0
    %893 = vmatpush1.bf16.msra.mxu0 %v876
    %894 = vmatprep.subr.bf16.mxu0 0
    %895 = vmatpush1.bf16.msra.mxu0 %v877
    %896 = vmatprep.subr.bf16.mxu0 0
    %897 = vmatpush1.bf16.msra.mxu0 %v878
    %898 = vmatprep.subr.bf16.mxu0 0
    %899 = vmatpush1.bf16.msra.mxu0 %v879
    %900 = vmatprep.subr.bf16.mxu0 0
    %901 = vmatpush1.bf16.msra.mxu0 %v880
    %902 = vmatprep.subr.bf16.mxu0 0
    %903 = vmatpush1.bf16.msra.mxu0 %v881
    %904 = vmatprep.subr.bf16.mxu0 0
    %905 = vmatpush1.bf16.msra.mxu0 %v882
    %906 = vmatprep.subr.bf16.mxu0 0
    %907 = vmatpush1.bf16.msra.mxu0 %v883
    %908 = vmatprep.subr.bf16.mxu0 0
    %909 = vmatpush1.bf16.msra.mxu0 0
    %910 = vmatprep.subr.bf16.mxu0 0
    %911 = vmatpush1.bf16.msra.mxu0 0
    %912 = vmatprep.subr.bf16.mxu0 0
    %913 = vmatpush1.bf16.msra.mxu0 0
    %914 = vmatprep.subr.bf16.mxu0 0
    %915 = vmatpush1.bf16.msra.mxu0 0
    %916 = vmatprep.subr.bf16.mxu0 0
    %917 = vmatpush1.bf16.msra.mxu0 0
    %918 = vmatprep.subr.bf16.mxu0 0
    %919 = vmatpush1.bf16.msra.mxu0 0
    %920 = vmatprep.subr.bf16.mxu0 0
    %921 = vmatpush1.bf16.msra.mxu0 0
    %922 = vmatprep.subr.bf16.mxu0 0
    %923 = vmatpush1.bf16.msra.mxu0 0
    %924 = vmatprep.mubr.bf16.mxu0 0
    %925 = vmatmul.mubr.bf16.gmra.mrb[0].mxu0 %v822
    %v926 = vpop.f32.mrb[0].mxu0
    %v927 = vadd.f32 %v843, %v926
    %v928 = vpop.f32.mrb[0].mxu0
    %v929 = vpop.f32.mrb[0].mxu0
    %v930 = vadd.f32 %v843, %v929
    %v931 = vpop.f32.mrb[0].mxu0
    %932 = vdwg.mxu0
    %v933 = vmax.f32 %v927, 0.0
    %v934 = vmax.f32 %v930, 0.0
    %935 = vst [vmem:[%s3] sm:$0xff] %v933
    %936 = vst [vmem:[%s3 + $0x8] sm:$0xff] %v934
    // Predicated region
    $region18: #{fine_tuning_forward.1} parent=1 // pred_check
      _
    $region19: #{fine_tuning_forward.1} parent=1 // pred_check_branch
      %938 = sbr.rel (0) target = $region21
    $region20: #{fine_tuning_forward.1} parent=1 // pred_region
      _
    $region21: #{fine_tuning_forward.1} parent=1 // pred_fallthru
      _
    // Predicated region
    $region22: #{fine_tuning_forward.1} parent=1 // pred_check
      _
    $region23: #{fine_tuning_forward.1} parent=1 // pred_check_branch
      %940 = sbr.rel (0) target = $region25
    $region24: #{fine_tuning_forward.1} parent=1 // pred_region
      _
    $region25: #{fine_tuning_forward.1} parent=1 // pred_fallthru
      _
    %941 = vsyncpa [#allocation3], 1

</llo_original>
